<compile_context>
chip_gen: v7x
topology: tpu7x:2x2x1
jax: 0.10.0
libtpu: 0.0.40
codegen_flags: <defaults>
</compile_context>

<pallas_src>
import functools
import math

import jax
import jax.numpy as jnp
from jax import lax
from jax.experimental import pallas as pl
from jax.experimental.pallas import tpu as pltpu

_NEG_BIG = -1e30  # finite "minus infinity": exp(_NEG_BIG - m) flushes to 0.


def _round_up(v, m):
    return ((v + m - 1) // m) * m


def _sublane(dtype):
    # Native sublane count per dtype (f32:8, bf16:16, int8/fp8:32).
    return {4: 8, 2: 16, 1: 32}.get(jnp.dtype(dtype).itemsize, 8)


def _pick_col_tile(n, sub, cap):
    """Multiple-of-`sub` tile <= cap minimizing padded length (prefer larger)."""
    best_t, best_pad = sub, _round_up(n, sub)
    hi = min(cap, _round_up(n, sub))
    for t in range(sub, hi + 1, sub):
        pad = _round_up(n, t)
        if pad < best_pad or (pad == best_pad and t > best_t):
            best_t, best_pad = t, pad
    return best_t, best_pad


def _largest_divisor_tile(n_pad, sub, cap):
    """Largest multiple of `sub` that divides n_pad and is <= cap."""
    best = sub
    for t in range(sub, min(cap, n_pad) + 1, sub):
        if n_pad % t == 0:
            best = t
    return best


def _choose_tiles(n, sub, single_pass_max):
    """Returns (tile_i, tile_j, n_pad, single_pass)."""
    n_min = _round_up(n, sub)
    if n_min <= single_pass_max:
        n_pad = n_min
        tile_j = n_pad                       # single softmax pass
        if n_pad >= 2 * sub:
            # >=2 row tiles when cheap (v7x megacore); avoid degenerate tiles.
            cand = _largest_divisor_tile(n_pad, sub, max(sub, n_pad // 2))
            tile_i = cand if cand * 4 >= n_pad else n_pad
        else:
            tile_i = n_pad
        return tile_i, tile_j, n_pad, True
    # Flash path: tile_j <= 128, tile_i as large as the ~32-vreg score tile allows.
    tile_j, n_pad = _pick_col_tile(n, sub, 128)
    cap_i = min(512, max(tile_j, 32768 // tile_j))   # tile_i*tile_j <= 256*128 f32
    tile_i = _largest_divisor_tile(n_pad, sub, cap_i)
    return tile_i, tile_j, n_pad, False


def _vmem_limit(block_bytes):
    # Derived from the actual tile footprint (2x buffering + headroom),
    # clamped so it stays safe on v7x (64 MiB/TC) and useful on v5e/v6e.
    return int(min(max(4 * block_bytes, 16 * 1024 * 1024), 40 * 1024 * 1024))


# --------------------------------------------------------------------------
# Kernel 1: fused linear projection  proj = x @ W + b   (W pre-transposed,
# key columns of W/b pre-scaled by 1/sqrt(out_size) in f32 in the wrapper).
# --------------------------------------------------------------------------
def _proj_kernel(x_ref, w_ref, b_ref, p_ref):
    acc = jnp.dot(x_ref[...], w_ref[...], preferred_element_type=jnp.float32)
    p_ref[...] = (acc + b_ref[...].astype(jnp.float32)).astype(p_ref.dtype)


# --------------------------------------------------------------------------
# Kernel 2a: single-pass attention (whole softmax axis resident in VMEM).
# --------------------------------------------------------------------------
def _attn_single_kernel(*refs, n_valid, res, masked):
    if res:
        k_ref, q_ref, v_ref, xres_ref, o_ref = refs
    else:
        k_ref, q_ref, v_ref, o_ref = refs
        xres_ref = None

    # scores[i, j] = key[i] . query[j]  (contract feature dims, no transpose).
    s = lax.dot_general(
        k_ref[...], q_ref[...],
        dimension_numbers=(((1,), (1,)), ((), ())),
        preferred_element_type=jnp.float32,
    )
    if masked:  # static: only emitted when row padding exists
        col = lax.broadcasted_iota(jnp.int32, s.shape, 1)
        s = jnp.where(col < n_valid, s, _NEG_BIG)

    m = jnp.max(s, axis=1, keepdims=True)
    p = jnp.exp(s - m)
    l = jnp.sum(p, axis=1, keepdims=True)
    inv = pl.reciprocal(l, approx=True)
    inv = inv * (2.0 - l * inv)              # one Newton step -> ~f32 accuracy
    out = jnp.dot(p.astype(v_ref.dtype), v_ref[...],
                  preferred_element_type=jnp.float32) * inv
    if res:
        out = out + xres_ref[...].astype(jnp.float32)
    o_ref[...] = out.astype(o_ref.dtype)


# --------------------------------------------------------------------------
# Kernel 2b: flash-style attention with online softmax over column tiles.
#   key rows -> output rows (grid axis 0, "parallel")
#   query/value rows -> softmax axis (grid axis 1, "arbitrary", innermost)
# --------------------------------------------------------------------------
def _flash_kernel(*refs, n_valid, tile_j, res, masked):
    if res:
        k_ref, q_ref, v_ref, xres_ref, o_ref, m_sc, l_sc, acc_sc = refs
    else:
        k_ref, q_ref, v_ref, o_ref, m_sc, l_sc, acc_sc = refs
        xres_ref = None

    j = pl.program_id(1)

    @pl.when(j == 0)
    def _():
        m_sc[...] = jnp.full_like(m_sc, _NEG_BIG)
        l_sc[...] = jnp.zeros_like(l_sc)
        acc_sc[...] = jnp.zeros_like(acc_sc)

    s = lax.dot_general(
        k_ref[...], q_ref[...],
        dimension_numbers=(((1,), (1,)), ((), ())),
        preferred_element_type=jnp.float32,
    )
    if masked:
        # Padding only lives in the last j tile; for earlier tiles the predicate
        # is all-true.  The whole block is skipped statically when n == n_pad.
        col = j * tile_j + lax.broadcasted_iota(jnp.int32, s.shape, 1)
        s = jnp.where(col < n_valid, s, _NEG_BIG)

    m_prev = m_sc[...]
    m_new = jnp.maximum(m_prev, jnp.max(s, axis=1, keepdims=True))
    alpha = jnp.exp(m_prev - m_new)
    # TODO(synk): on v6e/v7x a bf16 exp would double EUP throughput; kept f32
    # for accuracy and v5e compatibility.
    p = jnp.exp(s - m_new)

    l_sc[...] = alpha * l_sc[...] + jnp.sum(p, axis=1, keepdims=True)
    acc_sc[...] = alpha * acc_sc[...] + jnp.dot(
        p.astype(v_ref.dtype), v_ref[...], preferred_element_type=jnp.float32)
    m_sc[...] = m_new

    @pl.when(j == pl.num_programs(1) - 1)
    def _():
        l = l_sc[...]
        inv = pl.reciprocal(l, approx=True)
        inv = inv * (2.0 - l * inv)
        out = acc_sc[...] * inv
        if res:
            out = out + xres_ref[...].astype(jnp.float32)
        o_ref[...] = out.astype(o_ref.dtype)


# --------------------------------------------------------------------------
# Wrapper
# --------------------------------------------------------------------------
def attention_layer(x, w, b, *, out_size, res=False, mxu_dtype=None,
                    single_pass_max=256, weight_resident_bytes=8 * 1024 * 1024):
    """x: (N, in_size); w: (in_size, 3*out_size); b: (3*out_size,).

    mxu_dtype: optionally feed the MXU (and the proj->attention HBM hop) in a
    narrower dtype (e.g. jnp.bfloat16); softmax math stays f32.
    """
    n, in_size = x.shape
    assert w.shape == (in_size, 3 * out_size)
    assert b.shape == (3 * out_size,)
    if res:
        assert in_size == out_size, "res=True requires in_size == out_size"

    out_dtype = jnp.dtype(x.dtype)
    op_dtype = jnp.dtype(mxu_dtype) if mxu_dtype is not None else out_dtype
    op_isz = op_dtype.itemsize
    out_isz = out_dtype.itemsize
    f32 = jnp.float32

    sub = _sublane(op_dtype)
    dp = _round_up(out_size, 128)                 # lane-dense per-chunk width
    tile_i, tile_j, n_pad, single = _choose_tiles(n, sub, single_pass_max)
    masked = (n_pad != n)
    grid_rows = n_pad // tile_i

    # Fold the 1/sqrt(out_size) score scale into the key columns of W/b in
    # f32 *before* any downcast, then zero-pad each chunk to dp lanes.
    scale = 1.0 / math.sqrt(out_size)
    w_f = w.astype(f32)
    b_f = b.astype(f32)
    w_f = jnp.concatenate([w_f[:, :out_size] * scale, w_f[:, out_size:]], axis=1)
    b_f = jnp.concatenate([b_f[:out_size] * scale, b_f[out_size:]])
    if dp != out_size:
        w_p = jnp.pad(w_f.reshape(in_size, 3, out_size),
                      ((0, 0), (0, 0), (0, dp - out_size))).reshape(in_size, 3 * dp)
        b_p = jnp.pad(b_f.reshape(3, out_size),
                      ((0, 0), (0, dp - out_size))).reshape(1, 3 * dp)
    else:
        w_p = w_f
        b_p = b_f.reshape(1, 3 * dp)
    w_p = w_p.astype(op_dtype)
    b_p = b_p.astype(f32)                          # bias added in f32 in-kernel

    x_p = x.astype(op_dtype)
    if n_pad != n:
        x_p = jnp.pad(x_p, ((0, n_pad - n), (0, 0)))

    # ---- 1) fused projection --------------------------------------------
    w_bytes = in_size * 3 * dp * op_isz
    if w_bytes <= weight_resident_bytes:
        # Small weight: keep it resident across the row grid.
        proj_grid = (grid_rows,)
        proj_in_specs = [
            pl.BlockSpec((tile_i, in_size), lambda i: (i, 0)),
            pl.BlockSpec((in_size, 3 * dp), lambda i: (0, 0)),   # resident
            pl.BlockSpec((1, 3 * dp), lambda i: (0, 0)),          # resident
        ]
        proj_out_spec = pl.BlockSpec((tile_i, 3 * dp), lambda i: (i, 0))
        proj_sem = ("parallel",)
        proj_block_bytes = ((tile_i * in_size + in_size * 3 * dp) * op_isz
                            + 3 * dp * 4 + tile_i * 3 * dp * op_isz)
    else:
        # Large weight (v7x VMEM safety): tile the 3*dp output columns so only
        # an (in_size, dp) weight block is ever resident.
        proj_grid = (grid_rows, 3)
        proj_in_specs = [
            pl.BlockSpec((tile_i, in_size), lambda i, c: (i, 0)),
            pl.BlockSpec((in_size, dp), lambda i, c: (0, c)),
            pl.BlockSpec((1, dp), lambda i, c: (0, c)),
        ]
        proj_out_spec = pl.BlockSpec((tile_i, dp), lambda i, c: (i, c))
        proj_sem = ("parallel", "parallel")
        proj_block_bytes = ((tile_i * in_size + in_size * dp) * op_isz
                            + dp * 4 + tile_i * dp * op_isz)

    proj = pl.pallas_call(
        _proj_kernel,
        out_shape=jax.ShapeDtypeStruct((n_pad, 3 * dp), op_dtype),
        grid=proj_grid,
        in_specs=proj_in_specs,
        out_specs=proj_out_spec,
        compiler_params=pltpu.CompilerParams(
            dimension_semantics=proj_sem,
            vmem_limit_bytes=_vmem_limit(proj_block_bytes)),
        cost_estimate=pl.CostEstimate(
            flops=2 * n_pad * in_size * 3 * dp,
            transcendentals=0,
            bytes_accessed=(n_pad * in_size + in_size * 3 * dp) * op_isz
                           + 3 * dp * 4 + n_pad * 3 * dp * op_isz),
    )(x_p, w_p, b_p)

    # Residual input, padded to (n_pad, dp), added in f32 after normalization.
    if res:
        x_res = x
        if n_pad != n:
            x_res = jnp.pad(x_res, ((0, n_pad - n), (0, 0)))
        if dp != in_size:
            x_res = jnp.pad(x_res, ((0, 0), (0, dp - in_size)))

    # ---- 2) attention ------------------------------------------------------
    if single:
        # Single-pass softmax: Q/V blocks are the full (n_pad, dp) chunks;
        # their block index is constant over the row grid, so they stay
        # resident in VMEM (no HBM re-reads).
        inputs = [proj, proj, proj]
        in_specs = [
            pl.BlockSpec((tile_i, dp), lambda i: (i, 0)),   # key (output rows)
            pl.BlockSpec((n_pad, dp), lambda i: (0, 1)),    # query (resident)
            pl.BlockSpec((n_pad, dp), lambda i: (0, 2)),    # value (resident)
        ]
        if res:
            inputs.append(x_res)
            in_specs.append(pl.BlockSpec((tile_i, dp), lambda i: (i, 0)))
        kernel = functools.partial(_attn_single_kernel,
                                   n_valid=n, res=res, masked=masked)
        block_bytes = ((tile_i * dp + 2 * n_pad * dp) * op_isz
                       + tile_i * dp * out_isz
                       + 2 * tile_i * n_pad * 4)           # score/prob temporaries
        if res:
            block_bytes += tile_i * dp * out_isz
        out = pl.pallas_call(
            kernel,
            out_shape=jax.ShapeDtypeStruct((n_pad, dp), out_dtype),
            grid=(grid_rows,),
            in_specs=in_specs,
            out_specs=pl.BlockSpec((tile_i, dp), lambda i: (i, 0)),
            compiler_params=pltpu.CompilerParams(
                dimension_semantics=("parallel",),
                vmem_limit_bytes=_vmem_limit(block_bytes)),
            cost_estimate=pl.CostEstimate(
                flops=4 * n_pad * n_pad * dp,
                transcendentals=n_pad * n_pad,
                bytes_accessed=3 * n_pad * dp * op_isz + n_pad * dp * out_isz),
        )(*inputs)
    else:
        # Flash path: online softmax over j tiles; deeper buffering on the
        # streamed Q/V blocks when there are enough j steps (v5e HBM latency).
        stream_kwargs = {}
        if n_pad // tile_j >= 3:
            stream_kwargs = dict(pipeline_mode=pl.Buffered(3))
        inputs = [proj, proj, proj]
        in_specs = [
            pl.BlockSpec((tile_i, dp), lambda i, j: (i, 0)),               # key
            pl.BlockSpec((tile_j, dp), lambda i, j: (j, 1), **stream_kwargs),  # query
            pl.BlockSpec((tile_j, dp), lambda i, j: (j, 2), **stream_kwargs),  # value
        ]
        if res:
            inputs.append(x_res)
            in_specs.append(pl.BlockSpec((tile_i, dp), lambda i, j: (i, 0)))
        kernel = functools.partial(_flash_kernel, n_valid=n, tile_j=tile_j,
                                   res=res, masked=masked)
        block_bytes = ((tile_i * dp + 2 * tile_j * dp) * op_isz
                       + tile_i * dp * out_isz
                       + tile_i * (dp + 2) * 4              # m/l/acc scratch
                       + 2 * tile_i * tile_j * 4)           # score/prob temporaries
        if res:
            block_bytes += tile_i * dp * out_isz
        out = pl.pallas_call(
            kernel,
            out_shape=jax.ShapeDtypeStruct((n_pad, dp), out_dtype),
            grid=(grid_rows, n_pad // tile_j),
            in_specs=in_specs,
            out_specs=pl.BlockSpec((tile_i, dp), lambda i, j: (i, 0)),
            scratch_shapes=[
                pltpu.VMEM((tile_i, 1), jnp.float32),    # running max
                pltpu.VMEM((tile_i, 1), jnp.float32),    # running denom
                pltpu.VMEM((tile_i, dp), jnp.float32),   # output accumulator
            ],
            compiler_params=pltpu.CompilerParams(
                dimension_semantics=("parallel", "arbitrary"),
                vmem_limit_bytes=_vmem_limit(block_bytes)),
            cost_estimate=pl.CostEstimate(
                flops=4 * n_pad * n_pad * dp,
                transcendentals=n_pad * n_pad,
                # Q/V are re-read once per row tile.
                bytes_accessed=(n_pad * dp + 2 * grid_rows * n_pad * dp) * op_isz
                               + n_pad * dp * out_isz),
        )(*inputs)

    return out[:n, :out_size]


# --------------------------------------------------------------------------
# Pure-JAX reference
# --------------------------------------------------------------------------
def attention_layer_ref(x, w, b, *, out_size, res=False):
    proj = x @ w + b
    key, query, value = jnp.split(proj, 3, axis=1)
    kq = jax.nn.softmax(key @ query.T / math.sqrt(out_size), axis=1)
    out = kq @ value
    return out + x if res else out


if __name__ == "__main__":
    IN_SIZE, OUT_SIZE = 32, 32

    key = jax.random.PRNGKey(0)
    kx, kw, kb = jax.random.split(key, 3)
    bound = 1.0 / math.sqrt(IN_SIZE)   # nn.Linear-style init range
    w = jax.random.uniform(kw, (IN_SIZE, 3 * OUT_SIZE), jnp.float32, -bound, bound)
    b = jax.random.uniform(kb, (3 * OUT_SIZE,), jnp.float32, -bound, bound)
    x_all = jax.random.normal(kx, (640, IN_SIZE), dtype=jnp.float32)

    # (name, rows of x, wrapper kwargs, atol, rtol)
    cases = [
        ("single/f32",          160, dict(res=False),                          1e-3, 1e-3),
        ("single/f32/res",      160, dict(res=True),                           1e-3, 1e-3),
        ("single/f32/masked",   150, dict(res=False),                          1e-3, 1e-3),
        ("flash/f32/tiled-W",   640, dict(res=False, weight_resident_bytes=0), 1e-3, 1e-3),
        ("single/bf16-mxu/res", 160, dict(res=True, mxu_dtype=jnp.bfloat16),   1e-1, 1e-1),
    ]

    ok = True
    for name, rows, kwargs, atol, rtol in cases:
        xs = x_all[:rows]
        out = attention_layer(xs, w, b, out_size=OUT_SIZE, **kwargs)
        out = jax.block_until_ready(out)
        ref = attention_layer_ref(xs, w, b, out_size=OUT_SIZE,
                                  res=kwargs.get("res", False))
        if not jnp.allclose(out, ref, atol=atol, rtol=rtol):
            ok = False
            print("mismatch %s: max abs err = %e"
                  % (name, float(jnp.max(jnp.abs(out - ref)))))

    if ok:
        print("KERNEL_OK")
</pallas_src>

<mosaic_0001>
module attributes {stable_mosaic.version = 11 : i64} {
  func.func @_proj_kernel(%arg0: i32, %arg1: memref<80x32xf32, #tpu.memory_space<vmem>>, %arg2: memref<32x384xf32, #tpu.memory_space<vmem>>, %arg3: memref<1x384xf32, #tpu.memory_space<vmem>>, %arg4: memref<80x384xf32, #tpu.memory_space<vmem>>) attributes {dimension_semantics = [#tpu.dimension_semantics<parallel>], iteration_bounds = array<i64: 2>, scalar_prefetch = 0 : i64, scratch_operands = 0 : i64, tpu.core_type = #tpu.core_type<tc>, window_params = [{transform_indices = @transform_0, window_bounds = array<i64: 80, 32>}, {pipeline_mode = #tpu.pipeline_mode<synchronous>, transform_indices = @transform_1, window_bounds = array<i64: 32, 384>}, {pipeline_mode = #tpu.pipeline_mode<synchronous>, transform_indices = @transform_2, window_bounds = array<i64: 1, 384>}, {transform_indices = @transform_3, window_bounds = array<i64: 80, 384>}]} {
    %c0 = arith.constant 0 : index
    %c0_0 = arith.constant 0 : index
    %0 = vector.load %arg1[%c0, %c0_0] : memref<80x32xf32, #tpu.memory_space<vmem>>, vector<80x32xf32>
    %c0_1 = arith.constant 0 : index
    %c0_2 = arith.constant 0 : index
    %1 = vector.load %arg2[%c0_1, %c0_2] : memref<32x384xf32, #tpu.memory_space<vmem>>, vector<32x384xf32>
    %cst = arith.constant dense<0.000000e+00> : vector<80x384xf32>
    %2 = tpu.matmul %0, %1, %cst {dimension_numbers = #tpu.dot_dimension_numbers<[1], [0], [0], [1], [0, 0, 1, 1], [], []>} : vector<80x32xf32>, vector<32x384xf32>, vector<80x384xf32> -> vector<80x384xf32>
    %c0_3 = arith.constant 0 : index
    %c0_4 = arith.constant 0 : index
    %3 = vector.load %arg3[%c0_3, %c0_4] : memref<1x384xf32, #tpu.memory_space<vmem>>, vector<1x384xf32>
    %4 = vector.broadcast %3 : vector<1x384xf32> to vector<80x384xf32>
    %5 = arith.addf %2, %4 : vector<80x384xf32>
    %c0_5 = arith.constant 0 : index
    %c0_6 = arith.constant 0 : index
    %6 = vector.load %arg4[%c0_5, %c0_6] : memref<80x384xf32, #tpu.memory_space<vmem>>, vector<80x384xf32>
    tpu.vector_store %arg4[%c0_5, %c0_6], %5 {strides = array<i32>} : memref<80x384xf32, #tpu.memory_space<vmem>>, vector<80x384xf32>,
    return
  }
  func.func @transform_0(%arg0: i32) -> (i32, i32) {
    %c0_i32 = arith.constant 0 : i32
    %c0_i32_0 = arith.constant 0 : i32
    return %arg0, %c0_i32 : i32, i32
  }
  func.func @transform_1(%arg0: i32) -> (i32, i32) {
    %c0_i32 = arith.constant 0 : i32
    %c0_i32_0 = arith.constant 0 : i32
    %c0_i32_1 = arith.constant 0 : i32
    return %c0_i32, %c0_i32_0 : i32, i32
  }
  func.func @transform_2(%arg0: i32) -> (i32, i32) {
    %c0_i32 = arith.constant 0 : i32
    %c0_i32_0 = arith.constant 0 : i32
    %c0_i32_1 = arith.constant 0 : i32
    return %c0_i32, %c0_i32_0 : i32, i32
  }
  func.func @transform_3(%arg0: i32) -> (i32, i32) {
    %c0_i32 = arith.constant 0 : i32
    %c0_i32_0 = arith.constant 0 : i32
    return %arg0, %c0_i32 : i32, i32
  }
}

</mosaic_0001>

<llo_original>
// kernel: tpu_custom_call.1
$region0: #{tpu_custom_call.1}
  #allocation0 [shape = 'u32[]', space=smem, size = 0x4, offset = 0x4, fixed_abs, tag = 'smem constant byte address 0x4 - core index']
  #allocation1 [shape = 'u32[144,128]{1,0:T(1,128)}', space=vmem, size = 0x12000, scoped, tag = 'internal scratch']
  %s0 = inlined_call_operand.vmem [shape: f32[160,32], index: 0, kind: input, shape index: {}]
  %s1 = inlined_call_operand.vmem [shape: f32[32,384], index: 1, kind: input, shape index: {}]
  %s2 = inlined_call_operand.vmem [shape: f32[1,384], index: 2, kind: input, shape index: {}]
  %s3 = inlined_call_operand.hbm [shape: f32[160,384], index: 3, kind: output, shape index: {}]
  %s4 = sld [smem:[#allocation0]]
  $region45: #{tpu_custom_call.1} parent=0
    _
  %s6 = ssub.s32 1, %s4
  %s7 = scalar_select 0, %s6, %s4
  $region1: #{tpu_custom_call.1} parent=0
    #allocation2 [shape = 'u8[245760]{0}', space=vmem, size = 0x3c000, scoped, tag = 'output window, operand 0']
    #allocation3 [shape = 's32[2]{0}', space=sflag, size = 0x8, scoped, tag = 'scoped memory for tpu_custom_call.1']
    %8 = vsyncpa [#allocation3], 0
    %s9 = scalar_lea.sflag [#allocation3], 1
    %10 = vsyncpa %s9, 0
    loop: start=0, step=1, limit=4
    $region2: #{tpu_custom_call.1} parent=1 // loop_pre_header
      _
    $region3: #{tpu_custom_call.1} parent=1 // loop_header
      %s12 = sphi 0, %s16
      %p13 = scmp.ge.s32.totalorder %s12, 4
      %s22 = sphi 0, %s24
      %s25 = sphi 0, %s22
      %s26 = sphi 0, %s25
      %s42 = sphi 0, %s26
      %s46 = sphi 0, %s46
      %s48 = sphi 0, %s46
      %s49 = sphi 0, %s48
      %s63 = sphi 0, %s49
      %s67 = sphi 0, %s67
      %s69 = sphi 0, %s67
      %s70 = sphi 0, %s69
      %s84 = sphi 0, %s70
      %s90 = sphi 0, %s92
      %s93 = sphi 0, %s90
      %s94 = sphi 0, %s93
      %s110 = sphi 0, %s94
    $region4: #{tpu_custom_call.1} parent=1 // loop_header_branch
      %15 = sbr.rel (%p13) target = $region8
    $region5: #{tpu_custom_call.1} parent=1 // loop_body
      %s17 = ssub.s32 %s12, 1
      %s18 = ssub.s32 %s12, 2
      %s19 = sadd.s32 %s12, 1
      %s20 = ssub.s32 %s12, %s19
      %p21 = scmp.eq.s32.totalorder %s20, 0
      %s23 = sadd.s32 %s22, 1
      %s24 = scalar_select %p21, %s22, %s23
      %p27 = pneg %p21
      %p28 = scmp.eq.s32.totalorder %s12, 1
      %p29 = por %p27, %p28
      %p30 = scmp.ne.s32.totalorder %s22, %s25
      %p31 = scmp.eq.s32.totalorder %s12, 0
      %p32 = por %p30, %p31
      %p33 = scmp.ne.s32.totalorder %s22, %s25
      %p34 = scmp.eq.s32.totalorder %s17, 1
      %p35 = por %p33, %p34
      %p36 = scmp.ne.s32.totalorder %s25, %s26
      %p37 = scmp.eq.s32.totalorder %s17, 0
      %p38 = por %p36, %p37
      %p39 = scmp.ne.s32.totalorder %s25, %s26
      %p40 = scmp.eq.s32.totalorder %s18, 1
      %p41 = por %p39, %p40
      %p43 = scmp.ne.s32.totalorder %s26, %s42
      %p44 = scmp.eq.s32.totalorder %s18, 0
      %p45 = por %p43, %p44
      %s47 = sadd.s32 %s46, 1
      %p50 = scmp.eq.s32.totalorder %s12, 1
      %p51 = scmp.ne.s32.totalorder %s46, %s48
      %p52 = scmp.eq.s32.totalorder %s12, 0
      %p53 = por %p51, %p52
      %p54 = scmp.ne.s32.totalorder %s46, %s48
      %p55 = scmp.eq.s32.totalorder %s17, 1
      %p56 = por %p54, %p55
      %p57 = scmp.ne.s32.totalorder %s48, %s49
      %p58 = scmp.eq.s32.totalorder %s17, 0
      %p59 = por %p57, %p58
      %p60 = scmp.ne.s32.totalorder %s48, %s49
      %p61 = scmp.eq.s32.totalorder %s18, 1
      %p62 = por %p60, %p61
      %p64 = scmp.ne.s32.totalorder %s49, %s63
      %p65 = scmp.eq.s32.totalorder %s18, 0
      %p66 = por %p64, %p65
      %s68 = sadd.s32 %s67, 1
      %p71 = scmp.eq.s32.totalorder %s12, 1
      %p72 = scmp.ne.s32.totalorder %s67, %s69
      %p73 = scmp.eq.s32.totalorder %s12, 0
      %p74 = por %p72, %p73
      %p75 = scmp.ne.s32.totalorder %s67, %s69
      %p76 = scmp.eq.s32.totalorder %s17, 1
      %p77 = por %p75, %p76
      %p78 = scmp.ne.s32.totalorder %s69, %s70
      %p79 = scmp.eq.s32.totalorder %s17, 0
      %p80 = por %p78, %p79
      %p81 = scmp.ne.s32.totalorder %s69, %s70
      %p82 = scmp.eq.s32.totalorder %s18, 1
      %p83 = por %p81, %p82
      %p85 = scmp.ne.s32.totalorder %s70, %s84
      %p86 = scmp.eq.s32.totalorder %s18, 0
      %p87 = por %p85, %p86
      %s88 = ssub.s32 %s12, %s19
      %p89 = scmp.eq.s32.totalorder %s88, 0
      %s91 = sadd.s32 %s90, 1
      %s92 = scalar_select %p89, %s90, %s91
      %p95 = pneg %p89
      %p96 = scmp.eq.s32.totalorder %s12, 1
      %p97 = por %p95, %p96
      %p98 = scmp.ne.s32.totalorder %s90, %s93
      %p99 = scmp.eq.s32.totalorder %s12, 0
      %p100 = por %p98, %p99
      %p101 = scmp.ne.s32.totalorder %s90, %s93
      %p102 = scmp.eq.s32.totalorder %s17, 1
      %p103 = por %p101, %p102
      %p104 = scmp.ne.s32.totalorder %s93, %s94
      %p105 = scmp.eq.s32.totalorder %s17, 0
      %p106 = por %p104, %p105
      %p107 = scmp.ne.s32.totalorder %s93, %s94
      %p108 = scmp.eq.s32.totalorder %s18, 1
      %p109 = por %p107, %p108
      %p111 = scmp.ne.s32.totalorder %s94, %s110
      %p112 = scmp.eq.s32.totalorder %s18, 0
      %p113 = por %p111, %p112
      %p114 = scmp.le.s32.totalorder 1, %s12
      %p115 = scmp.lt.s32.totalorder %s12, 3
      %p116 = pnand %p114, %p115
      %p117 = pneg %p116
      // Predicated region
      $region9: #{tpu_custom_call.1} parent=5 // pred_check
        _
      $region10: #{tpu_custom_call.1} parent=5 // pred_check_branch
        %119 = sbr.rel (%p116) target = $region12
      $region11: #{tpu_custom_call.1} parent=5 // pred_region
        %s120 = ssub.s32 %s12, 1
        // Predicated region
        $region13: #{tpu_custom_call.1} parent=11 // pred_check
          %p121 = pneg %p59
        $region14: #{tpu_custom_call.1} parent=11 // pred_check_branch
          %123 = sbr.rel (%p121) target = $region16
        $region15: #{tpu_custom_call.1} parent=11 // pred_region
          _
        $region16: #{tpu_custom_call.1} parent=11 // pred_fallthru
          _
        // Predicated region
        $region17: #{tpu_custom_call.1} parent=11 // pred_check
          %p124 = pneg %p80
        $region18: #{tpu_custom_call.1} parent=11 // pred_check_branch
          %126 = sbr.rel (%p124) target = $region20
        $region19: #{tpu_custom_call.1} parent=11 // pred_region
          _
        $region20: #{tpu_custom_call.1} parent=11 // pred_fallthru
          _
      $region12: #{tpu_custom_call.1} parent=5 // pred_fallthru
        _
      %p127 = scmp.lt.s32.totalorder %s12, 2
      // Predicated region
      $region21: #{tpu_custom_call.1} parent=5 // pred_check
        %p128 = pneg %p127
      $region22: #{tpu_custom_call.1} parent=5 // pred_check_branch
        %130 = sbr.rel (%p128) target = $region24
      $region23: #{tpu_custom_call.1} parent=5 // pred_region
        // Predicated region
        $region25: #{tpu_custom_call.1} parent=23 // pred_check
          %p131 = pneg %p32
        $region26: #{tpu_custom_call.1} parent=23 // pred_check_branch
          %133 = sbr.rel (%p131) target = $region28
        $region27: #{tpu_custom_call.1} parent=23 // pred_region
          %s134 = smul.u32 10, %s12
          %p135 = scmp.lt.s32.totalorder %s134, 19
          %s136 = scalar_select %p135, %s134, 19
          %s137 = smul.addr %s136, 8
          %s138 = scalar_lea.vmem %s0, %s137
          %s139 = smul.u32 10, %s12
        $region28: #{tpu_custom_call.1} parent=23 // pred_fallthru
          _
      $region24: #{tpu_custom_call.1} parent=5 // pred_fallthru
        _
      %p140 = scmp.le.s32.totalorder 1, %s12
      %p141 = scmp.lt.s32.totalorder %s12, 3
      %p142 = pnand %p140, %p141
      %p143 = pneg %p142
      // Predicated region
      $region29: #{tpu_custom_call.1} parent=5 // pred_check
        _
      $region30: #{tpu_custom_call.1} parent=5 // pred_check_branch
        %145 = sbr.rel (%p142) target = $region32
      $region31: #{tpu_custom_call.1} parent=5 // pred_region
        %s146 = ssub.s32 %s12, 1
        %s147 = smul.u32 10, %s17
        %p148 = scmp.lt.s32.totalorder %s147, 19
        %s149 = scalar_select %p148, %s147, 19
        %s150 = smul.addr %s149, 8
        %s151 = scalar_lea.vmem %s0, %s150
        %p152 = pneg %p38
        %p153 = pneg %p35
        %p154 = pneg %p59
        %p155 = pneg %p56
        %p156 = pneg %p80
        %p157 = pneg %p77
        %p158 = pneg %p106
        %p159 = pneg %p103
        %s160 = sand.u32 %s93, 1
        %s161 = scalar_lea.sflag [#allocation3], %s160
        %s162 = sand.u32 %s93, 1
        %s163 = smul.addr %s162, 240
        %s164 = scalar_lea.vmem [#allocation2], %s163
        %s165 = smul.u32 10, %s17
        %p166 = scmp.lt.s32.totalorder %s165, 19
        %s167 = scalar_select %p166, %s165, 19
        %s168 = smul.addr %s167, 8
        %s169 = scalar_lea.vmem %s0, %s168
        %s170 = smul.u32 10, %s17
        %s171 = smul.u32 10, %s17
        %v172 = vld [vmem:[%s169] sm:$0xff]
        %v173 = vld [vmem:[%s169 + $0x8] sm:$0xff]
        %v174 = vld [vmem:[%s169 + $0x10] sm:$0xff]
        %v175 = vld [vmem:[%s169 + $0x18] sm:$0xff]
        %v176 = vld [vmem:[%s169 + $0x20] sm:$0xff]
        %v177 = vld [vmem:[%s169 + $0x28] sm:$0xff]
        %v178 = vld [vmem:[%s169 + $0x30] sm:$0xff]
        %v179 = vld [vmem:[%s169 + $0x38] sm:$0xff]
        %v180 = vld [vmem:[%s169 + $0x40] sm:$0xff]
        %v181 = vld [vmem:[%s169 + $0x48] sm:$0xff]
        %v182 = vld [vmem:[%s1] sm:$0xff]
        %v183 = vld [vmem:[%s1 + $0x8] sm:$0xff]
        %v184 = vld [vmem:[%s1 + $0x10] sm:$0xff]
        %v185 = vld [vmem:[%s1 + $0x18] sm:$0xff]
        %v186 = vld [vmem:[%s1 + $0x20] sm:$0xff]
        %v187 = vld [vmem:[%s1 + $0x28] sm:$0xff]
        %v188 = vld [vmem:[%s1 + $0x30] sm:$0xff]
        %v189 = vld [vmem:[%s1 + $0x38] sm:$0xff]
        %v190 = vld [vmem:[%s1 + $0x40] sm:$0xff]
        %v191 = vld [vmem:[%s1 + $0x48] sm:$0xff]
        %v192 = vld [vmem:[%s1 + $0x50] sm:$0xff]
        %v193 = vld [vmem:[%s1 + $0x58] sm:$0xff]
        %v194 = vld [vmem:[%s2] sm:$0x7]
        %v196 = vlaneseq
        %v197 = vshrl.u32 %v196, 7
        %v198 = vsub.s32 0, %v197
        %v199 = vrot.slane %v194, %v198
        %v200 = vlaneseq
        %v201 = vshrl.u32 %v200, 7
        %v202 = vsub.s32 1, %v201
        %v203 = vrot.slane %v194, %v202
        %v204 = vlaneseq
        %v205 = vshrl.u32 %v204, 7
        %v206 = vsub.s32 2, %v205
        %v207 = vrot.slane %v194, %v206
        %vm211 = vcmask 261120
        %v213 = vsel %vm211, %v172, 0
        %v216 = vsel %vm211, %v173, 0
        %v219 = vsel %vm211, %v174, 0
        %v222 = vsel %vm211, %v175, 0
        %v225 = vsel %vm211, %v176, 0
        %v228 = vsel %vm211, %v177, 0
        %v231 = vsel %vm211, %v178, 0
        %v234 = vsel %vm211, %v179, 0
        %v237 = vsel %vm211, %v180, 0
        %v240 = vsel %vm211, %v181, 0
        %242 = vmatprep.subr.mxu0 %v183
        %243 = vmatpush1.msra.mxu0 %v182
        %244 = vmatprep.subr.mxu0 %v186
        %245 = vmatpush1.msra.mxu0 %v185
        %246 = vmatprep.subr.mxu0 %v189
        %247 = vmatpush1.msra.mxu0 %v188
        %248 = vmatprep.subr.mxu0 %v192
        %249 = vmatpush1.msra.mxu0 %v191
        %250 = vmatprep.subr.mxu0 0.0
        %251 = vmatpush1.msra.mxu0 0.0
        %252 = vmatprep.subr.mxu0 0.0
        %253 = vmatpush1.msra.mxu0 0.0
        %254 = vmatprep.subr.mxu0 0.0
        %255 = vmatpush1.msra.mxu0 0.0
        %256 = vmatprep.subr.mxu0 0.0
        %257 = vmatpush1.msra.mxu0 0.0
        %258 = vmatprep.subr.mxu0 0.0
        %259 = vmatpush1.msra.mxu0 0.0
        %260 = vmatprep.subr.mxu0 0.0
        %261 = vmatpush1.msra.mxu0 0.0
        %262 = vmatprep.subr.mxu0 0.0
        %263 = vmatpush1.msra.mxu0 0.0
        %264 = vmatprep.subr.mxu0 0.0
        %265 = vmatpush1.msra.mxu0 0.0
        %266 = vmatprep.subr.mxu0 0.0
        %267 = vmatpush1.msra.mxu0 0.0
        %268 = vmatprep.subr.mxu0 0.0
        %269 = vmatpush1.msra.mxu0 0.0
        %270 = vmatprep.subr.mxu0 0.0
        %271 = vmatpush1.msra.mxu0 0.0
        %272 = vmatprep.subr.mxu0 0.0
        %273 = vmatpush1.msra.mxu0 0.0
        %274 = vmatprep.subr.mxu0 0.0
        %275 = vmatpush1.msra.mxu0 0.0
        %276 = vmatprep.subr.mxu0 0.0
        %277 = vmatpush1.msra.mxu0 0.0
        %278 = vmatprep.subr.mxu0 0.0
        %279 = vmatpush1.msra.mxu0 0.0
        %280 = vmatprep.subr.mxu0 0.0
        %281 = vmatpush1.msra.mxu0 0.0
        %282 = vmatprep.subr.mxu0 0.0
        %283 = vmatpush1.msra.mxu0 0.0
        %284 = vmatprep.subr.mxu0 0.0
        %285 = vmatpush1.msra.mxu0 0.0
        %286 = vmatprep.subr.mxu0 0.0
        %287 = vmatpush1.msra.mxu0 0.0
        %288 = vmatprep.subr.mxu0 0.0
        %289 = vmatpush1.msra.mxu0 0.0
        %290 = vmatprep.subr.mxu0 0.0
        %291 = vmatpush1.msra.mxu0 0.0
        %292 = vmatprep.subr.mxu0 0.0
        %293 = vmatpush1.msra.mxu0 0.0
        %294 = vmatprep.subr.mxu0 0.0
        %295 = vmatpush1.msra.mxu0 0.0
        %296 = vmatprep.subr.mxu0 0.0
        %297 = vmatpush1.msra.mxu0 0.0
        %298 = vmatprep.subr.mxu0 0.0
        %299 = vmatpush1.msra.mxu0 0.0
        %300 = vmatprep.subr.mxu0 0.0
        %301 = vmatpush1.msra.mxu0 0.0
        %302 = vmatprep.subr.mxu0 0.0
        %303 = vmatpush1.msra.mxu0 0.0
        %304 = vmatprep.subr.mxu0 0.0
        %305 = vmatpush1.msra.mxu0 0.0
        %306 = vmatprep.mubr.f32.mxu0 0.0
        %307 = vmatmul.mubr.f32.gmra.mrb[0].mxu0 %v213
        %v308 = vpop.f32.mrb[0].mxu0
        %v309 = vadd.f32 %v199, %v308
        %v310 = vpop.f32.mrb[0].mxu0
        %v311 = vadd.f32 %v203, %v310
        %312 = vmatprep.mubr.f32.mxu0 0.0
        %313 = vmatmul.mubr.f32.gmra.mrb[0].mxu0 %v216
        %v314 = vpop.f32.mrb[0].mxu0
        %v315 = vadd.f32 %v199, %v314
        %v316 = vpop.f32.mrb[0].mxu0
        %v317 = vadd.f32 %v203, %v316
        %318 = vmatprep.mubr.f32.mxu0 0.0
        %319 = vmatmul.mubr.f32.gmra.mrb[0].mxu0 %v219
        %v320 = vpop.f32.mrb[0].mxu0
        %v321 = vadd.f32 %v199, %v320
        %v322 = vpop.f32.mrb[0].mxu0
        %v323 = vadd.f32 %v203, %v322
        %324 = vmatprep.mubr.f32.mxu0 0.0
        %325 = vmatmul.mubr.f32.gmra.mrb[0].mxu0 %v222
        %v326 = vpop.f32.mrb[0].mxu0
        %v327 = vadd.f32 %v199, %v326
        %v328 = vpop.f32.mrb[0].mxu0
        %v329 = vadd.f32 %v203, %v328
        %330 = vmatprep.mubr.f32.mxu0 0.0
        %331 = vmatmul.mubr.f32.gmra.mrb[0].mxu0 %v225
        %v332 = vpop.f32.mrb[0].mxu0
        %v333 = vadd.f32 %v199, %v332
        %v334 = vpop.f32.mrb[0].mxu0
        %v335 = vadd.f32 %v203, %v334
        %336 = vmatprep.mubr.f32.mxu0 0.0
        %337 = vmatmul.mubr.f32.gmra.mrb[0].mxu0 %v228
        %v338 = vpop.f32.mrb[0].mxu0
        %v339 = vadd.f32 %v199, %v338
        %v340 = vpop.f32.mrb[0].mxu0
        %v341 = vadd.f32 %v203, %v340
        %342 = vmatprep.mubr.f32.mxu0 0.0
        %343 = vmatmul.mubr.f32.gmra.mrb[0].mxu0 %v231
        %v344 = vpop.f32.mrb[0].mxu0
        %v345 = vadd.f32 %v199, %v344
        %v346 = vpop.f32.mrb[0].mxu0
        %v347 = vadd.f32 %v203, %v346
        %348 = vmatprep.mubr.f32.mxu0 0.0
        %349 = vmatmul.mubr.f32.gmra.mrb[0].mxu0 %v234
        %v350 = vpop.f32.mrb[0].mxu0
        %v351 = vadd.f32 %v199, %v350
        %v352 = vpop.f32.mrb[0].mxu0
        %v353 = vadd.f32 %v203, %v352
        %354 = vmatprep.mubr.f32.mxu0 0.0
        %355 = vmatmul.mubr.f32.gmra.mrb[0].mxu0 %v237
        %v356 = vpop.f32.mrb[0].mxu0
        %v357 = vadd.f32 %v199, %v356
        %v358 = vpop.f32.mrb[0].mxu0
        %v359 = vadd.f32 %v203, %v358
        %360 = vmatprep.mubr.f32.mxu0 0.0
        %361 = vmatmul.mubr.f32.gmra.mrb[0].mxu0 %v240
        %v362 = vpop.f32.mrb[0].mxu0
        %v363 = vadd.f32 %v199, %v362
        %v364 = vpop.f32.mrb[0].mxu0
        %v365 = vadd.f32 %v203, %v364
        %366 = vdwg.mxu0
        %367 = vmatprep.subr.mxu0 0.0
        %368 = vmatpush1.msra.mxu0 %v184
        %369 = vmatprep.subr.mxu0 0.0
        %370 = vmatpush1.msra.mxu0 %v187
        %371 = vmatprep.subr.mxu0 0.0
        %372 = vmatpush1.msra.mxu0 %v190
        %373 = vmatprep.subr.mxu0 0.0
        %374 = vmatpush1.msra.mxu0 %v193
        %375 = vmatprep.subr.mxu0 0.0
        %376 = vmatpush1.msra.mxu0 0.0
        %377 = vmatprep.subr.mxu0 0.0
        %378 = vmatpush1.msra.mxu0 0.0
        %379 = vmatprep.subr.mxu0 0.0
        %380 = vmatpush1.msra.mxu0 0.0
        %381 = vmatprep.subr.mxu0 0.0
        %382 = vmatpush1.msra.mxu0 0.0
        %383 = vmatprep.subr.mxu0 0.0
        %384 = vmatpush1.msra.mxu0 0.0
        %385 = vmatprep.subr.mxu0 0.0
        %386 = vmatpush1.msra.mxu0 0.0
        %387 = vmatprep.subr.mxu0 0.0
        %388 = vmatpush1.msra.mxu0 0.0
        %389 = vmatprep.subr.mxu0 0.0
        %390 = vmatpush1.msra.mxu0 0.0
        %391 = vmatprep.subr.mxu0 0.0
        %392 = vmatpush1.msra.mxu0 0.0
        %393 = vmatprep.subr.mxu0 0.0
        %394 = vmatpush1.msra.mxu0 0.0
        %395 = vmatprep.subr.mxu0 0.0
        %396 = vmatpush1.msra.mxu0 0.0
        %397 = vmatprep.subr.mxu0 0.0
        %398 = vmatpush1.msra.mxu0 0.0
        %399 = vmatprep.subr.mxu0 0.0
        %400 = vmatpush1.msra.mxu0 0.0
        %401 = vmatprep.subr.mxu0 0.0
        %402 = vmatpush1.msra.mxu0 0.0
        %403 = vmatprep.subr.mxu0 0.0
        %404 = vmatpush1.msra.mxu0 0.0
        %405 = vmatprep.subr.mxu0 0.0
        %406 = vmatpush1.msra.mxu0 0.0
        %407 = vmatprep.subr.mxu0 0.0
        %408 = vmatpush1.msra.mxu0 0.0
        %409 = vmatprep.subr.mxu0 0.0
        %410 = vmatpush1.msra.mxu0 0.0
        %411 = vmatprep.subr.mxu0 0.0
        %412 = vmatpush1.msra.mxu0 0.0
        %413 = vmatprep.subr.mxu0 0.0
        %414 = vmatpush1.msra.mxu0 0.0
        %415 = vmatprep.subr.mxu0 0.0
        %416 = vmatpush1.msra.mxu0 0.0
        %417 = vmatprep.subr.mxu0 0.0
        %418 = vmatpush1.msra.mxu0 0.0
        %419 = vmatprep.subr.mxu0 0.0
        %420 = vmatpush1.msra.mxu0 0.0
        %421 = vmatprep.subr.mxu0 0.0
        %422 = vmatpush1.msra.mxu0 0.0
        %423 = vmatprep.subr.mxu0 0.0
        %424 = vmatpush1.msra.mxu0 0.0
        %425 = vmatprep.subr.mxu0 0.0
        %426 = vmatpush1.msra.mxu0 0.0
        %427 = vmatprep.subr.mxu0 0.0
        %428 = vmatpush1.msra.mxu0 0.0
        %429 = vmatprep.subr.mxu0 0.0
        %430 = vmatpush1.msra.mxu0 0.0
        %431 = vmatprep.mubr.f32.mxu0 0.0
        %432 = vmatmul.mubr.f32.gmra.mrb[0].mxu0 %v213
        %v433 = vpop.f32.mrb[0].mxu0
        %v434 = vadd.f32 %v207, %v433
        %v435 = vpop.f32.mrb[0].mxu0
        %436 = vmatprep.mubr.f32.mxu0 0.0
        %437 = vmatmul.mubr.f32.gmra.mrb[0].mxu0 %v216
        %v438 = vpop.f32.mrb[0].mxu0
        %v439 = vadd.f32 %v207, %v438
        %v440 = vpop.f32.mrb[0].mxu0
        %441 = vmatprep.mubr.f32.mxu0 0.0
        %442 = vmatmul.mubr.f32.gmra.mrb[0].mxu0 %v219
        %v443 = vpop.f32.mrb[0].mxu0
        %v444 = vadd.f32 %v207, %v443
        %v445 = vpop.f32.mrb[0].mxu0
        %446 = vmatprep.mubr.f32.mxu0 0.0
        %447 = vmatmul.mubr.f32.gmra.mrb[0].mxu0 %v222
        %v448 = vpop.f32.mrb[0].mxu0
        %v449 = vadd.f32 %v207, %v448
        %v450 = vpop.f32.mrb[0].mxu0
        %451 = vmatprep.mubr.f32.mxu0 0.0
        %452 = vmatmul.mubr.f32.gmra.mrb[0].mxu0 %v225
        %v453 = vpop.f32.mrb[0].mxu0
        %v454 = vadd.f32 %v207, %v453
        %v455 = vpop.f32.mrb[0].mxu0
        %456 = vmatprep.mubr.f32.mxu0 0.0
        %457 = vmatmul.mubr.f32.gmra.mrb[0].mxu0 %v228
        %v458 = vpop.f32.mrb[0].mxu0
        %v459 = vadd.f32 %v207, %v458
        %v460 = vpop.f32.mrb[0].mxu0
        %461 = vmatprep.mubr.f32.mxu0 0.0
        %462 = vmatmul.mubr.f32.gmra.mrb[0].mxu0 %v231
        %v463 = vpop.f32.mrb[0].mxu0
        %v464 = vadd.f32 %v207, %v463
        %v465 = vpop.f32.mrb[0].mxu0
        %466 = vmatprep.mubr.f32.mxu0 0.0
        %467 = vmatmul.mubr.f32.gmra.mrb[0].mxu0 %v234
        %v468 = vpop.f32.mrb[0].mxu0
        %v469 = vadd.f32 %v207, %v468
        %v470 = vpop.f32.mrb[0].mxu0
        %471 = vmatprep.mubr.f32.mxu0 0.0
        %472 = vmatmul.mubr.f32.gmra.mrb[0].mxu0 %v237
        %v473 = vpop.f32.mrb[0].mxu0
        %v474 = vadd.f32 %v207, %v473
        %v475 = vpop.f32.mrb[0].mxu0
        %476 = vmatprep.mubr.f32.mxu0 0.0
        %477 = vmatmul.mubr.f32.gmra.mrb[0].mxu0 %v240
        %v478 = vpop.f32.mrb[0].mxu0
        %v479 = vadd.f32 %v207, %v478
        %v480 = vpop.f32.mrb[0].mxu0
        %481 = vdwg.mxu0
        %482 = vst [vmem:[%s164] sm:$0xff] %v309
        %483 = vst [vmem:[%s164 + $0x8] sm:$0xff] %v311
        %484 = vst [vmem:[%s164 + $0x10] sm:$0xff] %v434
        %485 = vst [vmem:[%s164 + $0x18] sm:$0xff] %v315
        %486 = vst [vmem:[%s164 + $0x20] sm:$0xff] %v317
        %487 = vst [vmem:[%s164 + $0x28] sm:$0xff] %v439
        %488 = vst [vmem:[%s164 + $0x30] sm:$0xff] %v321
        %489 = vst [vmem:[%s164 + $0x38] sm:$0xff] %v323
        %490 = vst [vmem:[%s164 + $0x40] sm:$0xff] %v444
        %491 = vst [vmem:[%s164 + $0x48] sm:$0xff] %v327
        %492 = vst [vmem:[%s164 + $0x50] sm:$0xff] %v329
        %493 = vst [vmem:[%s164 + $0x58] sm:$0xff] %v449
        %494 = vst [vmem:[%s164 + $0x60] sm:$0xff] %v333
        %495 = vst [vmem:[%s164 + $0x68] sm:$0xff] %v335
        %496 = vst [vmem:[%s164 + $0x70] sm:$0xff] %v454
        %497 = vst [vmem:[%s164 + $0x78] sm:$0xff] %v339
        %498 = vst [vmem:[%s164 + $0x80] sm:$0xff] %v341
        %499 = vst [vmem:[%s164 + $0x88] sm:$0xff] %v459
        %500 = vst [vmem:[%s164 + $0x90] sm:$0xff] %v345
        %501 = vst [vmem:[%s164 + $0x98] sm:$0xff] %v347
        %502 = vst [vmem:[%s164 + $0xa0] sm:$0xff] %v464
        %503 = vst [vmem:[%s164 + $0xa8] sm:$0xff] %v351
        %504 = vst [vmem:[%s164 + $0xb0] sm:$0xff] %v353
        %505 = vst [vmem:[%s164 + $0xb8] sm:$0xff] %v469
        %506 = vst [vmem:[%s164 + $0xc0] sm:$0xff] %v357
        %507 = vst [vmem:[%s164 + $0xc8] sm:$0xff] %v359
        %508 = vst [vmem:[%s164 + $0xd0] sm:$0xff] %v474
        %509 = vst [vmem:[%s164 + $0xd8] sm:$0xff] %v363
        %510 = vst [vmem:[%s164 + $0xe0] sm:$0xff] %v365
        %511 = vst [vmem:[%s164 + $0xe8] sm:$0xff] %v479
        %s512 = sand.u32 %s93, 1
        %s513 = scalar_lea.sflag [#allocation3], %s512
        %s514 = sand.u32 %s93, 1
        %s515 = smul.addr %s514, 240
        %s516 = scalar_lea.vmem [#allocation2], %s515
        // Predicated region
        $region33: #{tpu_custom_call.1} parent=31 // pred_check
          %p517 = pneg %p103
        $region34: #{tpu_custom_call.1} parent=31 // pred_check_branch
          %519 = sbr.rel (%p517) target = $region36
        $region35: #{tpu_custom_call.1} parent=31 // pred_region
          %s520 = smul.u32 10, %s17
          %s522 = ssub.s32 3840, 3840
          %523 = vsyncadd %s513, %s522
          %s524 = smul.addr %s520, 3
          %s525 = smul.addr %s524, 128
          %s526 = scalar_lea.hbm %s3, %s525
          %s527 = sshll.u32 %s516, 4
          %s528 = int_to_ptr.vmem [resolvable:$true] %s527
          %533 = dma.vmem_to_hbm [thread:$0]  %s528, 3840, %s526, %s513, 384, 384, 24
        $region36: #{tpu_custom_call.1} parent=31 // pred_fallthru
          _
      $region32: #{tpu_custom_call.1} parent=5 // pred_fallthru
        _
      %p534 = scmp.le.s32.totalorder 2, %s12
      // Predicated region
      $region37: #{tpu_custom_call.1} parent=5 // pred_check
        %p535 = pneg %p534
      $region38: #{tpu_custom_call.1} parent=5 // pred_check_branch
        %537 = sbr.rel (%p535) target = $region40
      $region39: #{tpu_custom_call.1} parent=5 // pred_region
        %s538 = ssub.s32 %s12, 2
        // Predicated region
        $region41: #{tpu_custom_call.1} parent=39 // pred_check
          %p539 = pneg %p109
        $region42: #{tpu_custom_call.1} parent=39 // pred_check_branch
          %541 = sbr.rel (%p539) target = $region44
        $region43: #{tpu_custom_call.1} parent=39 // pred_region
          %s542 = sand.u32 %s94, 1
          %s543 = scalar_lea.sflag [#allocation3], %s542
          %s544 = sand.u32 %s94, 1
          %s545 = smul.addr %s544, 240
          %s546 = scalar_lea.vmem [#allocation2], %s545
          %547 = dma.done %s543, 3840
        $region44: #{tpu_custom_call.1} parent=39 // pred_fallthru
          _
      $region40: #{tpu_custom_call.1} parent=5 // pred_fallthru
        _
    $region6: #{tpu_custom_call.1} parent=1 // loop_footer
      %s16 = sadd.s32 1, %s12
    $region7: #{tpu_custom_call.1} parent=1 // loop_footer_branch
      %11 = sbr.rel target = $region3
    $region8: #{tpu_custom_call.1} parent=1 // loop_exit
      _
    %548 = vsyncpa [#allocation3], 1
    %s549 = scalar_lea.sflag [#allocation3], 1
    %550 = vsyncpa %s549, 1

</llo_original>
